<compile_context>
chip_gen: v7x
topology: tpu7x:2x2x1
jax: 0.10.0
libtpu: 0.0.40
codegen_flags: <defaults>
</compile_context>

<pallas_src>
import math

import jax
import jax.numpy as jnp
from jax import lax
from jax.experimental import pallas as pl
from jax.experimental.pallas import tpu as pltpu


# Dispatch thresholds (review: dense path wins for sub-~512 B rows and small C;
# break-even is higher on v7x's 3.2 TB/s HBM and lower on v5e, 512 B is a safe
# middle ground for all three generations).
_DENSE_ROW_BYTES_MAX = 512
_DENSE_MAX_CATEGORIES = 16
# Gather path: rows per grid step == static unroll factor == outstanding DMAs.
_GATHER_ROWS_PER_STEP = 8


# --------------------------------------------------------------------------
# Dense path: whole (TB, C, D) slab in VMEM, one-hot select on the VPU.
# --------------------------------------------------------------------------
def _dense_kernel(lbl_ref, x_ref, o_ref):
    tb, c, d = x_ref.shape
    lbl = lbl_ref[...]                                     # (tb, 1) int32
    cat = lax.broadcasted_iota(jnp.int32, (tb, c, d), 1)   # category index
    mask = cat == lbl[:, :, None]                          # (tb, c, d) one-hot
    sel = jnp.where(mask, x_ref[...], jnp.zeros((), x_ref.dtype))
    # Exactly one nonzero per (row, d) column, so the sum is an exact select.
    o_ref[...] = jnp.sum(sel, axis=1).astype(o_ref.dtype)


def _dense_tile_rows(batch: int, slab_row_bytes: int) -> int:
    """Rows per VMEM block: full batch when small, else a multiple of 8 that
    keeps the double-buffered x slab well under v7x's scoped VMEM budget."""
    budget = 2 * 1024 * 1024                          # per x block (x2 pipeline bufs)
    max_rows = min(512, max(8, budget // max(slab_row_bytes, 1)))
    if batch <= max_rows:
        return batch                                  # full batch -> layout-legal
    return (max_rows // 8) * 8                        # multiple of 8 sublanes


def _mask_out_dense(x3: jax.Array, labels: jax.Array) -> jax.Array:
    B, C, D = x3.shape
    itemsize = x3.dtype.itemsize
    tile_b = _dense_tile_rows(B, C * D * itemsize)
    num_tiles = pl.cdiv(B, tile_b)
    # Partial trailing tile: Pallas pads the overhanging input block and masks
    # the overhanging portion of the output block on writeback.
    return pl.pallas_call(
        _dense_kernel,
        out_shape=jax.ShapeDtypeStruct((B, D), x3.dtype),
        grid=(num_tiles,),
        in_specs=[
            pl.BlockSpec((tile_b, 1), lambda t: (t, 0)),        # labels
            pl.BlockSpec((tile_b, C, D), lambda t: (t, 0, 0)),  # x slab
        ],
        out_specs=pl.BlockSpec((tile_b, D), lambda t: (t, 0)),
        compiler_params=pltpu.CompilerParams(
            dimension_semantics=("parallel",),
        ),
        cost_estimate=pl.CostEstimate(
            flops=0,
            transcendentals=0,
            bytes_accessed=(B * C * D + B * D) * itemsize + B * 4,
        ),
    )(labels.reshape(B, 1), x3)


# --------------------------------------------------------------------------
# Gather path: direct HBM->HBM row DMAs, labels in SMEM via scalar prefetch.
# --------------------------------------------------------------------------
def _row_dma(i, base, n_cat, label_ref, x_ref, o_ref, sems):
    row = base + i
    src = row * n_cat + label_ref[row]
    return pltpu.make_async_copy(
        x_ref.at[pl.ds(src, 1), :],
        o_ref.at[pl.ds(row, 1), :],
        sems.at[i],
    )


def _gather_kernel(label_ref, x_ref, o_ref, sems):
    # label_ref: (B,)     int32, SMEM (scalar prefetch)
    # x_ref:     (B*C, D) input rows, HBM (memory_space=pl.ANY)
    # o_ref:     (B, D)   output rows, HBM (memory_space=pl.ANY)
    # sems:      (TILE,)  one DMA semaphore per row of this grid step
    n_rows = label_ref.shape[0]          # B
    n_cat = x_ref.shape[0] // n_rows     # C
    tile_rows = sems.shape[0]            # static unroll factor

    base = pl.program_id(0) * tile_rows

    # Issue every gather DMA of this tile first so they all overlap in the
    # DMA engines; statically unrolled for LLO scheduler visibility.
    for i in range(tile_rows):
        @pl.when(base + i < n_rows)
        def _(i=i):
            _row_dma(i, base, n_cat, label_ref, x_ref, o_ref, sems).start()

    # Drain: one semaphore per row and an identically reconstructed
    # descriptor, so each wait matches exactly one started copy (no shared
    # semaphore / equal-size tricks that would break under future chunking).
    for i in range(tile_rows):
        @pl.when(base + i < n_rows)
        def _(i=i):
            _row_dma(i, base, n_cat, label_ref, x_ref, o_ref, sems).wait()


def _mask_out_gather(x_flat: jax.Array, labels: jax.Array) -> jax.Array:
    _, D = x_flat.shape
    B = labels.shape[0]
    itemsize = x_flat.dtype.itemsize
    tile_rows = B if B <= _GATHER_ROWS_PER_STEP else _GATHER_ROWS_PER_STEP
    num_tiles = pl.cdiv(B, tile_rows)

    grid_spec = pltpu.PrefetchScalarGridSpec(
        num_scalar_prefetch=1,                          # labels -> SMEM
        grid=(num_tiles,),
        in_specs=[pl.BlockSpec(memory_space=pl.ANY)],   # x stays in HBM
        out_specs=pl.BlockSpec(memory_space=pl.ANY),    # out written via DMA
        scratch_shapes=[pltpu.SemaphoreType.DMA((tile_rows,))],
    )
    return pl.pallas_call(
        _gather_kernel,
        out_shape=jax.ShapeDtypeStruct((B, D), x_flat.dtype),
        grid_spec=grid_spec,
        compiler_params=pltpu.CompilerParams(
            dimension_semantics=("parallel",),          # rows independent (v7x megacore)
        ),
        cost_estimate=pl.CostEstimate(
            flops=0,
            transcendentals=0,
            bytes_accessed=2 * B * D * itemsize + B * 4,
        ),
    )(labels, x_flat)


# --------------------------------------------------------------------------
# Public wrapper (matches MaskOut(n_category).forward(x, label)).
# --------------------------------------------------------------------------
def mask_out(x: jax.Array, label, n_category: int) -> jax.Array:
    B, C = x.shape[0], x.shape[1]
    assert C == n_category, "x.shape[1] must equal n_category"
    trailing = tuple(x.shape[2:])
    d_flat = int(math.prod(trailing)) if trailing else 1

    label_arr = jnp.asarray(label, dtype=jnp.int32).reshape(B)
    # TODO(synk): torch's runtime bounds assert on `label` has no cheap traced
    # equivalent; we clip instead so a bad label can never become an OOB DMA.
    label_arr = jnp.clip(label_arr, 0, n_category - 1)

    itemsize = x.dtype.itemsize
    row_bytes = d_flat * itemsize

    # x is a freshly laid-out (B, C, *rest) array, so these reshapes are free
    # (contiguous); a transposed/sliced x would have to be copied by XLA first.
    if row_bytes <= _DENSE_ROW_BYTES_MAX and C <= _DENSE_MAX_CATEGORIES:
        out_flat = _mask_out_dense(x.reshape(B, C, d_flat), label_arr)
    else:
        out_flat = _mask_out_gather(x.reshape(B * C, d_flat), label_arr)

    return out_flat.reshape((B,) + trailing) if trailing else out_flat.reshape(B)


if __name__ == "__main__":
    key = jax.random.PRNGKey(0)
    k1, k2 = jax.random.split(key)

    # --- Dense (small-row) path: (B, C, D) = (2, 4, 32) f32, 128-byte rows. ---
    B1, C1, D1 = 2, 4, 32
    x1 = jax.random.normal(k1, (B1, C1, D1), dtype=jnp.float32)
    lbl1 = [1, 3]
    out1 = jax.block_until_ready(mask_out(x1, lbl1, C1))
    ref1 = x1[jnp.arange(B1), jnp.asarray(lbl1)]
    assert out1.shape == (B1, D1) and out1.dtype == x1.dtype
    assert jnp.array_equal(out1, ref1), "dense-path MaskOut mismatch vs reference"

    # --- Gather (HBM->HBM DMA) path: (B, C, 16, 16) f32, 1 KiB rows. ---
    B2, C2, H2, W2 = 3, 4, 16, 16
    x2 = jax.random.normal(k2, (B2, C2, H2, W2), dtype=jnp.float32)
    lbl2 = jnp.array([2, 0, 3], dtype=jnp.int32)
    out2 = jax.block_until_ready(mask_out(x2, lbl2, C2))
    ref2 = x2[jnp.arange(B2), lbl2]
    assert out2.shape == (B2, H2, W2) and out2.dtype == x2.dtype
    assert jnp.array_equal(out2, ref2), "gather-path MaskOut mismatch vs reference"

    print("KERNEL_OK")
</pallas_src>

<mosaic_0001>
module attributes {stable_mosaic.version = 11 : i64} {
  func.func @_dense_kernel(%arg0: i32, %arg1: memref<2x1xi32, #tpu.memory_space<vmem>>, %arg2: memref<2x4x32xf32, #tpu.memory_space<vmem>>, %arg3: memref<2x32xf32, #tpu.memory_space<vmem>>) attributes {dimension_semantics = [#tpu.dimension_semantics<parallel>], iteration_bounds = array<i64: 1>, scalar_prefetch = 0 : i64, scratch_operands = 0 : i64, tpu.core_type = #tpu.core_type<tc>, window_params = [{transform_indices = @transform_0, window_bounds = array<i64: 2, 1>}, {transform_indices = @transform_1, window_bounds = array<i64: 2, 4, 32>}, {transform_indices = @transform_2, window_bounds = array<i64: 2, 32>}]} {
    %c0 = arith.constant 0 : index
    %c0_0 = arith.constant 0 : index
    %0 = vector.load %arg1[%c0, %c0_0] : memref<2x1xi32, #tpu.memory_space<vmem>>, vector<2x1xi32>
    %1 = tpu.iota {dimensions = array<i32: 1>} : vector<2x4x32xi32>
    %2 = vector.shape_cast %0 : vector<2x1xi32> to vector<2x1x1xi32>
    %3 = vector.broadcast %2 : vector<2x1x1xi32> to vector<2x4x32xi32>
    %4 = arith.cmpi eq, %1, %3 : vector<2x4x32xi32>
    %c0_1 = arith.constant 0 : index
    %c0_2 = arith.constant 0 : index
    %c0_3 = arith.constant 0 : index
    %5 = vector.load %arg2[%c0_1, %c0_2, %c0_3] : memref<2x4x32xf32, #tpu.memory_space<vmem>>, vector<2x4x32xf32>
    %cst = arith.constant 0.000000e+00 : f32
    %6 = vector.broadcast %cst : f32 to vector<2x4x32xf32>
    %7 = arith.select %4, %5, %6 : vector<2x4x32xi1>, vector<2x4x32xf32>
    %cst_4 = arith.constant dense<0.000000e+00> : vector<2x32xf32>
    %8 = vector.multi_reduction <add>, %7, %cst_4 [1] : vector<2x4x32xf32> to vector<2x32xf32>
    %c0_5 = arith.constant 0 : index
    %c0_6 = arith.constant 0 : index
    %9 = vector.load %arg3[%c0_5, %c0_6] : memref<2x32xf32, #tpu.memory_space<vmem>>, vector<2x32xf32>
    tpu.vector_store %arg3[%c0_5, %c0_6], %8 {strides = array<i32>} : memref<2x32xf32, #tpu.memory_space<vmem>>, vector<2x32xf32>,
    return
  }
  func.func @transform_0(%arg0: i32) -> (i32, i32) {
    %c0_i32 = arith.constant 0 : i32
    %c0_i32_0 = arith.constant 0 : i32
    return %arg0, %c0_i32 : i32, i32
  }
  func.func @transform_1(%arg0: i32) -> (i32, i32, i32) {
    %c0_i32 = arith.constant 0 : i32
    %c0_i32_0 = arith.constant 0 : i32
    %c0_i32_1 = arith.constant 0 : i32
    return %arg0, %c0_i32, %c0_i32_0 : i32, i32, i32
  }
  func.func @transform_2(%arg0: i32) -> (i32, i32) {
    %c0_i32 = arith.constant 0 : i32
    %c0_i32_0 = arith.constant 0 : i32
    return %arg0, %c0_i32 : i32, i32
  }
}

</mosaic_0001>

<llo_original>
// kernel: tpu_custom_call.1
$region0: #{tpu_custom_call.1}
  #allocation0 [shape = 'u32[]', space=smem, size = 0x4, offset = 0x4, fixed_abs, tag = 'smem constant byte address 0x4 - core index']
  #allocation1 [shape = 'u32[144,128]{1,0:T(1,128)}', space=vmem, size = 0x12000, scoped, tag = 'internal scratch']
  %s0 = inlined_call_operand.vmem [shape: s32[2,1], index: 0, kind: input, shape index: {}]
  %s1 = inlined_call_operand.hbm [shape: f32[2,4,32], index: 1, kind: input, shape index: {}]
  %s2 = inlined_call_operand.hbm [shape: f32[2,32], index: 2, kind: output, shape index: {}]
  %s3 = sld [smem:[#allocation0]]
  $region22: #{tpu_custom_call.1} parent=0
    _
  %s5 = ssub.s32 1, %s3
  %s6 = scalar_select 0, %s5, %s3
  $region1: #{tpu_custom_call.1} parent=0
    #allocation2 [shape = 'u8[4096]{0}', space=vmem, size = 0x1000, scoped, tag = 'input window, operand 1, single buffered']
    #allocation3 [shape = 's32[1]{0}', space=sflag, size = 0x4, scoped, tag = 'scoped memory for tpu_custom_call.1']
    #allocation4 [shape = 's32[1]{0}', space=sflag, size = 0x4, scoped, tag = 'scoped memory for tpu_custom_call.1']
    #allocation5 [shape = 'u8[1024]{0}', space=vmem, size = 0x400, scoped, tag = 'output window, operand 0, single buffered']
    %7 = vsyncpa [#allocation3], 0
    %8 = vsyncpa [#allocation4], 0
    // Predicated region
    $region2: #{tpu_custom_call.1} parent=1 // pred_check
      _
    $region3: #{tpu_custom_call.1} parent=1 // pred_check_branch
      %10 = sbr.rel (0) target = $region5
    $region4: #{tpu_custom_call.1} parent=1 // pred_region
      _
    $region5: #{tpu_custom_call.1} parent=1 // pred_fallthru
      _
    // Predicated region
    $region6: #{tpu_custom_call.1} parent=1 // pred_check
      _
    $region7: #{tpu_custom_call.1} parent=1 // pred_check_branch
      %12 = sbr.rel (0) target = $region9
    $region8: #{tpu_custom_call.1} parent=1 // pred_region
      %s14 = ssub.s32 128, 128
      %15 = vsyncadd [#allocation3], %s14
      %s16 = sshll.u32 [#allocation2], 4
      %s17 = int_to_ptr.vmem [resolvable:$true] %s16
      %22 = dma.hbm_to_vmem [thread:$0]  %s1, 128, %s17, [#allocation3], 64, 64, 4
    $region9: #{tpu_custom_call.1} parent=1 // pred_fallthru
      _
    // Predicated region
    $region10: #{tpu_custom_call.1} parent=1 // pred_check
      _
    $region11: #{tpu_custom_call.1} parent=1 // pred_check_branch
      %24 = sbr.rel (0) target = $region13
    $region12: #{tpu_custom_call.1} parent=1 // pred_region
      %25 = dma.done [#allocation3], 128
    $region13: #{tpu_custom_call.1} parent=1 // pred_fallthru
      _
    %v26 = vld [vmem:[%s0] sm:$0x3]
    %v27 = vlaneseq
    %v28 = vshrl.u32 %v27, 7
    %v30 = vunpack.c.l.s4 1966171168
    %v31 = vunpack.c.0.s8 %v30
    %v32 = vlaneseq
    %v33 = vshrl.u32 %v32, 7
    %v34 = vsub.s32 %v31, %v33
    %v35 = vrot.slane %v26, %v34
    %v36 = vcombine.high %v35, %v35
    %v38 = vunpack.c.l.s4 1966171168
    %v39 = vunpack.c.0.s8 %v38
    %v40 = vlaneseq
    %v41 = vshrl.u32 %v40, 7
    %v42 = vsub.s32 %v39, %v41
    %v43 = vrot.slane %v35, %v42
    %v45 = vunpack.c.l.s4 1966171168
    %v46 = vunpack.c.0.s8 %v45
    %v47 = vlaneseq
    %v48 = vshrl.u32 %v47, 7
    %v49 = vsub.s32 %v46, %v48
    %v50 = vrot.slane %v36, %v49
    %v51 = vlaneseq
    %v52 = vshrl.u32 %v51, 7
    %v53 = vsub.s32 0, %v52
    %v54 = vrot.slane %v43, %v53
    %v55 = vlaneseq
    %v56 = vshrl.u32 %v55, 7
    %v57 = vsub.s32 0, %v56
    %v58 = vrot.slane %v50, %v57
    %59 = vset.pattern.permute.xlu0 0
    %60 = vperm.xlu0 %59, %v54
    %v61 = vpop.permute.xlu0 %60
    %62 = vset.pattern.permute.xlu0 0
    %63 = vperm.xlu0 %62, %v58
    %v64 = vpop.permute.xlu0 %63
    %vm65 = vcmp.eq.s32.totalorder %v28, %v61
    %vm66 = vcmp.eq.s32.totalorder %v28, %v64
    %v67 = vld [vmem:[#allocation2] sm:$0xf]
    %v68 = vld [vmem:[#allocation2 + $0x4] sm:$0xf]
    %v69 = vsel %vm65, %v67, 0.0
    %v70 = vsel %vm66, %v68, 0.0
    %vm71 = vcmask 257024
    %v72 = vsel %vm71, %v69, 0.0
    %v73 = vrot.slane %v72, 4
    %v74 = vadd.f32 %v72, %v73
    %v75 = vrot.slane %v74, 2
    %v76 = vadd.f32 %v74, %v75
    %v77 = vrot.slane %v76, 1
    %v78 = vadd.f32 %v76, %v77
    %v79 = vsel %vm71, %v70, 0.0
    %v80 = vrot.slane %v79, 4
    %v81 = vadd.f32 %v79, %v80
    %v82 = vrot.slane %v81, 2
    %v83 = vadd.f32 %v81, %v82
    %v84 = vrot.slane %v83, 1
    %v85 = vadd.f32 %v83, %v84
    %vm88 = vcmask 1041409
    %v89 = vsel %vm88, %v85, %v78
    %vm91 = vcmask 254976
    %92 = vst.msk [vmem:[#allocation5] sm:$0x3] %vm91, %v89
    // Predicated region
    $region14: #{tpu_custom_call.1} parent=1 // pred_check
      _
    $region15: #{tpu_custom_call.1} parent=1 // pred_check_branch
      %94 = sbr.rel (0) target = $region17
    $region16: #{tpu_custom_call.1} parent=1 // pred_region
      %s96 = ssub.s32 32, 32
      %97 = vsyncadd [#allocation4], %s96
      %s99 = sshll.u32 [#allocation5], 4
      %s100 = int_to_ptr.vmem [resolvable:$true] %s99
      %102 = dma.vmem_to_hbm [thread:$0]  %s100, 32, %s2, [#allocation4]
    $region17: #{tpu_custom_call.1} parent=1 // pred_fallthru
      _
    // Predicated region
    $region18: #{tpu_custom_call.1} parent=1 // pred_check
      _
    $region19: #{tpu_custom_call.1} parent=1 // pred_check_branch
      %104 = sbr.rel (0) target = $region21
    $region20: #{tpu_custom_call.1} parent=1 // pred_region
      %105 = dma.done [#allocation4], 32
    $region21: #{tpu_custom_call.1} parent=1 // pred_fallthru
      _
    %106 = vsyncpa [#allocation3], 1
    %107 = vsyncpa [#allocation4], 1

</llo_original>
